<compile_context>
chip_gen: v5e
topology: v5e:2x2
jax: 0.10.0
libtpu: 0.0.40
codegen_flags: <defaults>
</compile_context>

<pallas_src>
import functools

import jax
import jax.numpy as jnp
from jax.experimental import pallas as pl
from jax.experimental.pallas import tpu as pltpu


LANE = 128          # lane width: batch-tile granularity
SUBLANE_BF16 = 16   # bf16 sublane pack granularity: feature-dim pad granularity
DEFAULT_TB = 1024   # max batch tile (lanes per grid step); multiple of 128

# dot_general dimension numbers for "A @ B^T" (contract last dim of both).
_NT_DIMS = (((1,), (1,)), ((), ()))


def _round_up(x: int, m: int) -> int:
    return (x + m - 1) // m * m


def _make_vnet_kernel(num_hidden_layers: int, bf16_act: bool):
    """Fused MLP kernel: `num_hidden_layers` tanh layers + V head.

    The kernel computes feature-major activations (features on sublanes, batch
    on lanes) so the (B, 1) value output is a lane-dense (1, TB) slab per tile.
    """

    def kernel(x_ref, *refs):
        # refs = [w1, b1, w2, b2, ..., wH, bH, wv, bv, out_ref]
        out_ref = refs[-1]
        params = refs[:-1]

        # Obs tile arrives batch-major (TB, D) f32; cast to bf16 for the MXU.
        h = x_ref[...].astype(jnp.bfloat16)

        for i in range(num_hidden_layers):
            w = params[2 * i][...]              # (out_p, in) bf16
            b = params[2 * i + 1][...]          # (out_p, 1)  f32
            if i == 0:
                # First layer contracts the feature dim of BOTH operands:
                # (out, D) x (TB, D) -> (out, TB).  This performs the
                # batch-major -> feature-major layout switch on the MXU/XLU,
                # so no transposed obs copy is ever materialized in HBM.
                a = jax.lax.dot_general(w, h, _NT_DIMS,
                                        preferred_element_type=jnp.float32)
            else:
                a = jnp.dot(w, h, preferred_element_type=jnp.float32)
            a = a + b                            # f32 accumulate + f32 bias
            if bf16_act:
                # v6e/v7x: bf16 EUP halves tanh pushes and drops a VALU cast.
                h = jnp.tanh(a.astype(jnp.bfloat16))
            elif i < num_hidden_layers - 1:
                # v5e-safe: f32 tanh, one bf16 cast per layer for the next MXU pass.
                h = jnp.tanh(a).astype(jnp.bfloat16)
            else:
                h = jnp.tanh(a)                  # keep last activations f32 for the head

        wv = params[-2][...]                     # (H_last_p, 1) f32
        bv = params[-1][...]                     # (1, 1)        f32
        # V head (N=1): VPU multiply + cross-sublane reduce instead of an MXU
        # pass; result is already the lane-dense (1, TB) output slab.
        v = jnp.sum(h.astype(jnp.float32) * wv, axis=0, keepdims=True) + bv
        out_ref[...] = v.astype(out_ref.dtype)

    return kernel


def init_vnetwork_params(key, observation_dim: int, hidden_dims_list: list[int]):
    """f32 params in PyTorch layout: [(W(out,in), b(out,)), ..., (Wv(1,in), bv(1,))].

    Mirrors layer_init: orthogonal weights (std=sqrt(2) hidden, 1.0 head), zero bias.
    """
    layers = []
    in_dim = observation_dim
    ortho = jax.nn.initializers.orthogonal
    for hidden_dim in hidden_dims_list:
        key, sub = jax.random.split(key)
        w = ortho(scale=jnp.sqrt(2.0))(sub, (hidden_dim, in_dim), jnp.float32)
        b = jnp.zeros((hidden_dim,), jnp.float32)
        layers.append((w, b))
        in_dim = hidden_dim
    key, sub = jax.random.split(key)
    wv = ortho(scale=1.0)(sub, (1, in_dim), jnp.float32)
    bv = jnp.zeros((1,), jnp.float32)
    layers.append((wv, bv))
    return layers


def pack_params_for_kernel(layers):
    """Minimal padding + kernel layout.

    Hidden weights -> bf16 (out_p, in_p) where out/in dims are padded only to
    the bf16 sublane pack granularity (16), NOT to 128 (the feature axis lives
    on sublanes in this feature-major kernel); the first layer's input dim is
    left at the true obs_dim (the obs tile is read unpadded).  Biases ->
    f32 (out_p, 1); head weight -> f32 column (H_last_p, 1); head bias (1, 1).
    Zero padding is exact: padded rows have zero weights/bias (tanh(0)=0) and
    zero head weights, so they never leak into the head reduce.
    """
    *hidden, (wv, bv) = layers
    packed = []
    for idx, (w, b) in enumerate(hidden):
        out_d, in_d = w.shape
        out_p = _round_up(out_d, SUBLANE_BF16)
        in_p = in_d if idx == 0 else _round_up(in_d, SUBLANE_BF16)
        w_p = jnp.zeros((out_p, in_p), jnp.bfloat16).at[:out_d, :in_d].set(
            w.astype(jnp.bfloat16))
        b_p = jnp.zeros((out_p, 1), jnp.float32).at[:out_d, 0].set(b)
        packed.extend([w_p, b_p])
    in_d = wv.shape[1]
    in_p = _round_up(in_d, SUBLANE_BF16)
    wv_p = jnp.zeros((in_p, 1), jnp.float32).at[:in_d, 0].set(wv[0])
    bv_p = bv.reshape(1, 1).astype(jnp.float32)
    packed.extend([wv_p, bv_p])
    return packed


@functools.partial(jax.jit, static_argnames=("tb", "bf16_act"))
def vnetwork_forward(observation, packed_params, tb: int = DEFAULT_TB,
                     bf16_act: bool = False):
    """observation: (B, observation_dim) f32 -> V: (B, 1) f32."""
    batch, obs_dim = observation.shape
    num_hidden = (len(packed_params) - 2) // 2
    assert num_hidden >= 1, "VNetwork kernel expects at least one hidden layer"

    # Batch tile: multiple of 128 (lanes), capped at `tb`, and small enough to
    # give >=2 grid steps whenever the batch allows it so ("parallel",) can
    # shard tiles across both v7x TensorCores (and reduce batch-pad waste).
    tb_eff = min(tb, max(LANE, _round_up(-(-batch // 2), LANE)))
    b_pad = _round_up(batch, tb_eff)
    grid = (b_pad // tb_eff,)

    # Observation read directly in its natural (B, D) f32 layout: block last
    # dim == full array dim is legal, no wrapper-side pad/transpose/cast copy.
    # The trailing partial block (if B % tb_eff != 0) reads undefined rows that
    # only ever affect discarded output columns (batch rows are independent).
    in_specs = [pl.BlockSpec((tb_eff, obs_dim), lambda i: (i, 0))]
    # Params: full-array blocks with constant index_map -> fetched once and
    # resident in VMEM across all batch tiles.  (For production-sized hidden
    # dims, pipeline_mode=pl.Buffered(1) would single-buffer them.)
    for p in packed_params:
        in_specs.append(pl.BlockSpec(p.shape, lambda i: (0, 0)))
    out_spec = pl.BlockSpec((1, tb_eff), lambda i: (0, i))

    # Advisory cost estimate from the true (unpadded-to-128) dims.
    feat = [obs_dim] + [packed_params[2 * i].shape[0] for i in range(num_hidden)]
    flops = sum(2 * b_pad * i_d * o_d for i_d, o_d in zip(feat[:-1], feat[1:]))
    flops += 2 * b_pad * feat[-1]                       # V head
    transcendentals = b_pad * sum(feat[1:])             # tanh
    bytes_accessed = (batch * obs_dim * 4
                      + sum(p.size * p.dtype.itemsize for p in packed_params)
                      + b_pad * 4)

    v_row = pl.pallas_call(
        _make_vnet_kernel(num_hidden, bf16_act),
        out_shape=jax.ShapeDtypeStruct((1, b_pad), jnp.float32),
        grid_spec=pltpu.PrefetchScalarGridSpec(
            num_scalar_prefetch=0,
            grid=grid,
            in_specs=in_specs,
            out_specs=out_spec,
        ),
        compiler_params=pltpu.CompilerParams(
            dimension_semantics=("parallel",),      # shard batch tiles across TCs
            vmem_limit_bytes=32 * 1024 * 1024,      # safe on v5e/v6e and v7x
        ),
        cost_estimate=pl.CostEstimate(
            flops=flops,
            transcendentals=transcendentals,
            bytes_accessed=bytes_accessed),
    )(observation, *packed_params)

    # Back to the PyTorch output shape (B, 1).
    return v_row[0, :batch].reshape(batch, 1)


def _default_bf16_act() -> bool:
    """bf16 tanh path on chips with bf16 VPU/EUP (v6e/v7x); f32 elsewhere."""
    try:
        kind = jax.devices()[0].device_kind.lower()
    except Exception:
        return False
    return not any(t in kind for t in ("v2", "v3", "v4", "v5"))


def vnetwork_reference(observation, layers):
    """Pure-JAX f32 forward of the PyTorch module (PyTorch weight layout)."""
    h = observation.astype(jnp.float32)
    *hidden, (wv, bv) = layers
    for w, b in hidden:
        h = jnp.tanh(h @ w.T + b)
    return h @ wv.T + bv


def _quantize_like_kernel(layers):
    """Hidden weights rounded to bf16 (as stored for the kernel); rest f32."""
    *hidden, (wv, bv) = layers
    q = [(w.astype(jnp.bfloat16).astype(jnp.float32), b) for w, b in hidden]
    q.append((wv, bv))
    return q


def _check(batch, observation_dim, hidden_dims_list, key, bf16_act):
    key_params, key_obs = jax.random.split(key)
    layers = init_vnetwork_params(key_params, observation_dim, hidden_dims_list)
    packed = pack_params_for_kernel(layers)
    observation = jax.random.normal(key_obs, (batch, observation_dim), jnp.float32)

    v = vnetwork_forward(observation, packed, bf16_act=bf16_act)
    v = jax.block_until_ready(v)

    # Reference with bf16-stored weights / bf16 obs stream, computed in f32
    # (the kernel additionally rounds intermediate activations / tanh inputs to
    # bf16 for the MXU/EUP, hence the loose tolerance).
    obs_q = observation.astype(jnp.bfloat16).astype(jnp.float32)
    v_ref = vnetwork_reference(obs_q, _quantize_like_kernel(layers))

    assert v.shape == (batch, 1), v.shape
    assert jnp.allclose(v, v_ref, atol=3e-2, rtol=3e-2), (v, v_ref)


if __name__ == "__main__":
    observation_dim = 32
    hidden_dims_list = [64, 64]
    bf16_act = _default_bf16_act()

    key = jax.random.PRNGKey(0)
    key_small, key_multi = jax.random.split(key)

    # Small batch (single grid step, partial batch tile).
    _check(8, observation_dim, hidden_dims_list, key_small, bf16_act)
    # Batch large enough for a 2-step grid (exercises resident weights +
    # megacore-parallel tiling + trailing partial block).
    _check(300, observation_dim, hidden_dims_list, key_multi, bf16_act)

    print("KERNEL_OK")
</pallas_src>

<mosaic_0001>
module attributes {stable_mosaic.version = 11 : i64} {
  func.func @kernel(%arg0: i32, %arg1: memref<128x32xf32, #tpu.memory_space<vmem>>, %arg2: memref<64x32xbf16, #tpu.memory_space<vmem>>, %arg3: memref<64x1xf32, #tpu.memory_space<vmem>>, %arg4: memref<64x64xbf16, #tpu.memory_space<vmem>>, %arg5: memref<64x1xf32, #tpu.memory_space<vmem>>, %arg6: memref<64x1xf32, #tpu.memory_space<vmem>>, %arg7: memref<1x1xf32, #tpu.memory_space<vmem>>, %arg8: memref<1x128xf32, #tpu.memory_space<vmem>>) attributes {dimension_semantics = [#tpu.dimension_semantics<parallel>], iteration_bounds = array<i64: 1>, scalar_prefetch = 0 : i64, scratch_operands = 0 : i64, tpu.core_type = #tpu.core_type<tc>, window_params = [{transform_indices = @transform_0, window_bounds = array<i64: 128, 32>}, {pipeline_mode = #tpu.pipeline_mode<synchronous>, transform_indices = @transform_1, window_bounds = array<i64: 64, 32>}, {pipeline_mode = #tpu.pipeline_mode<synchronous>, transform_indices = @transform_2, window_bounds = array<i64: 64, 1>}, {pipeline_mode = #tpu.pipeline_mode<synchronous>, transform_indices = @transform_3, window_bounds = array<i64: 64, 64>}, {pipeline_mode = #tpu.pipeline_mode<synchronous>, transform_indices = @transform_4, window_bounds = array<i64: 64, 1>}, {pipeline_mode = #tpu.pipeline_mode<synchronous>, transform_indices = @transform_5, window_bounds = array<i64: 64, 1>}, {pipeline_mode = #tpu.pipeline_mode<synchronous>, transform_indices = @transform_6, window_bounds = array<i64: 1, 1>}, {transform_indices = @transform_7, window_bounds = array<i64: 1, 128>}]} {
    %c0 = arith.constant 0 : index
    %c0_0 = arith.constant 0 : index
    %0 = vector.load %arg1[%c0, %c0_0] : memref<128x32xf32, #tpu.memory_space<vmem>>, vector<128x32xf32>
    %1 = arith.truncf %0 : vector<128x32xf32> to vector<128x32xbf16>
    %c0_1 = arith.constant 0 : index
    %c0_2 = arith.constant 0 : index
    %2 = vector.load %arg2[%c0_1, %c0_2] : memref<64x32xbf16, #tpu.memory_space<vmem>>, vector<64x32xbf16>
    %c0_3 = arith.constant 0 : index
    %c0_4 = arith.constant 0 : index
    %3 = vector.load %arg3[%c0_3, %c0_4] : memref<64x1xf32, #tpu.memory_space<vmem>>, vector<64x1xf32>
    %cst = arith.constant dense<0.000000e+00> : vector<64x128xf32>
    %4 = tpu.matmul %2, %1, %cst {dimension_numbers = #tpu.dot_dimension_numbers<[1], [1], [0], [0], [0, 0, 1, 0], [], []>} : vector<64x32xbf16>, vector<128x32xbf16>, vector<64x128xf32> -> vector<64x128xf32>
    %5 = vector.broadcast %3 : vector<64x1xf32> to vector<64x128xf32>
    %6 = arith.addf %4, %5 : vector<64x128xf32>
    %7 = arith.truncf %6 : vector<64x128xf32> to vector<64x128xbf16>
    %8 = math.tanh %7 : vector<64x128xbf16>
    %c0_5 = arith.constant 0 : index
    %c0_6 = arith.constant 0 : index
    %9 = vector.load %arg4[%c0_5, %c0_6] : memref<64x64xbf16, #tpu.memory_space<vmem>>, vector<64x64xbf16>
    %c0_7 = arith.constant 0 : index
    %c0_8 = arith.constant 0 : index
    %10 = vector.load %arg5[%c0_7, %c0_8] : memref<64x1xf32, #tpu.memory_space<vmem>>, vector<64x1xf32>
    %cst_9 = arith.constant dense<0.000000e+00> : vector<64x128xf32>
    %11 = tpu.matmul %9, %8, %cst_9 {dimension_numbers = #tpu.dot_dimension_numbers<[1], [0], [0], [1], [0, 0, 1, 1], [], []>} : vector<64x64xbf16>, vector<64x128xbf16>, vector<64x128xf32> -> vector<64x128xf32>
    %12 = vector.broadcast %10 : vector<64x1xf32> to vector<64x128xf32>
    %13 = arith.addf %11, %12 : vector<64x128xf32>
    %14 = arith.truncf %13 : vector<64x128xf32> to vector<64x128xbf16>
    %15 = math.tanh %14 : vector<64x128xbf16>
    %c0_10 = arith.constant 0 : index
    %c0_11 = arith.constant 0 : index
    %16 = vector.load %arg6[%c0_10, %c0_11] : memref<64x1xf32, #tpu.memory_space<vmem>>, vector<64x1xf32>
    %c0_12 = arith.constant 0 : index
    %c0_13 = arith.constant 0 : index
    %17 = vector.load %arg7[%c0_12, %c0_13] : memref<1x1xf32, #tpu.memory_space<vmem>>, vector<1x1xf32>
    %18 = arith.extf %15 : vector<64x128xbf16> to vector<64x128xf32>
    %19 = vector.broadcast %16 : vector<64x1xf32> to vector<64x128xf32>
    %20 = arith.mulf %18, %19 : vector<64x128xf32>
    %cst_14 = arith.constant dense<0.000000e+00> : vector<128xf32>
    %21 = vector.multi_reduction <add>, %20, %cst_14 [0] : vector<64x128xf32> to vector<128xf32>
    %22 = vector.shape_cast %21 : vector<128xf32> to vector<1x128xf32>
    %23 = vector.broadcast %17 : vector<1x1xf32> to vector<1x128xf32>
    %24 = arith.addf %22, %23 : vector<1x128xf32>
    %c0_15 = arith.constant 0 : index
    %c0_16 = arith.constant 0 : index
    %25 = vector.load %arg8[%c0_15, %c0_16] : memref<1x128xf32, #tpu.memory_space<vmem>>, vector<1x128xf32>
    tpu.vector_store %arg8[%c0_15, %c0_16], %24 {strides = array<i32>} : memref<1x128xf32, #tpu.memory_space<vmem>>, vector<1x128xf32>,
    return
  }
  func.func @transform_0(%arg0: i32) -> (i32, i32) {
    %c0_i32 = arith.constant 0 : i32
    %c0_i32_0 = arith.constant 0 : i32
    return %arg0, %c0_i32 : i32, i32
  }
  func.func @transform_1(%arg0: i32) -> (i32, i32) {
    %c0_i32 = arith.constant 0 : i32
    %c0_i32_0 = arith.constant 0 : i32
    %c0_i32_1 = arith.constant 0 : i32
    return %c0_i32, %c0_i32_0 : i32, i32
  }
  func.func @transform_2(%arg0: i32) -> (i32, i32) {
    %c0_i32 = arith.constant 0 : i32
    %c0_i32_0 = arith.constant 0 : i32
    %c0_i32_1 = arith.constant 0 : i32
    return %c0_i32, %c0_i32_0 : i32, i32
  }
  func.func @transform_3(%arg0: i32) -> (i32, i32) {
    %c0_i32 = arith.constant 0 : i32
    %c0_i32_0 = arith.constant 0 : i32
    %c0_i32_1 = arith.constant 0 : i32
    return %c0_i32, %c0_i32_0 : i32, i32
  }
  func.func @transform_4(%arg0: i32) -> (i32, i32) {
    %c0_i32 = arith.constant 0 : i32
    %c0_i32_0 = arith.constant 0 : i32
    %c0_i32_1 = arith.constant 0 : i32
    return %c0_i32, %c0_i32_0 : i32, i32
  }
  func.func @transform_5(%arg0: i32) -> (i32, i32) {
    %c0_i32 = arith.constant 0 : i32
    %c0_i32_0 = arith.constant 0 : i32
    %c0_i32_1 = arith.constant 0 : i32
    return %c0_i32, %c0_i32_0 : i32, i32
  }
  func.func @transform_6(%arg0: i32) -> (i32, i32) {
    %c0_i32 = arith.constant 0 : i32
    %c0_i32_0 = arith.constant 0 : i32
    %c0_i32_1 = arith.constant 0 : i32
    return %c0_i32, %c0_i32_0 : i32, i32
  }
  func.func @transform_7(%arg0: i32) -> (i32, i32) {
    %c0_i32 = arith.constant 0 : i32
    %c0_i32_0 = arith.constant 0 : i32
    return %c0_i32, %arg0 : i32, i32
  }
}

</mosaic_0001>

<llo_original>
// kernel: vnetwork_forward.1
$region0: #{vnetwork_forward.1}
  #allocation0 [shape = 'u32[]', space=smem, size = 0x4, offset = 0x4, fixed_abs, tag = 'smem constant byte address 0x4 - core index']
  #allocation1 [shape = 'u32[72,128]{1,0:T(1,128)}', space=vmem, size = 0x9000, scoped, tag = 'internal scratch']
  #allocation2 [shape = 'f32[1,1]{1,0:T(1,128)S(1)}', space=vmem, size = 0x200, scoped, tag = 'scoped memory for vnetwork_forward.1']
  %s0 = inlined_call_operand.vmem [shape: f32[8,32], index: 0, kind: input, shape index: {}]
  %s1 = inlined_call_operand.vmem [shape: bf16[64,32], index: 1, kind: input, shape index: {}]
  %s2 = inlined_call_operand.vmem [shape: f32[64,1], index: 2, kind: input, shape index: {}]
  %s3 = inlined_call_operand.vmem [shape: bf16[64,64], index: 3, kind: input, shape index: {}]
  %s4 = inlined_call_operand.vmem [shape: f32[64,1], index: 4, kind: input, shape index: {}]
  %s5 = inlined_call_operand.vmem [shape: f32[64,1], index: 5, kind: input, shape index: {}]
  %s6 = inlined_call_operand.<no memory space> [shape: f32[1,1], index: 6, kind: input, shape index: {}]
  %s7 = inlined_call_operand.vmem [shape: f32[1,128], index: 7, kind: output, shape index: {}]
  %s8 = sld [smem:[#allocation0]]
  $region38: #{vnetwork_forward.1} parent=0
    _
  %s10 = ssub.s32 1, %s8
  %s11 = scalar_select 0, %s10, %s8
  %v12 = vstv %s6
  %13 = vst [vmem:[#allocation2] sm:$0x1] %v12
  // Predicated region
  $region2: #{vnetwork_forward.1} parent=0 // pred_check
    _
  $region3: #{vnetwork_forward.1} parent=0 // pred_check_branch
    %15 = sbr.rel (0) target = $region5
  $region4: #{vnetwork_forward.1} parent=0 // pred_region
    _
  $region5: #{vnetwork_forward.1} parent=0 // pred_fallthru
    _
  // Predicated region
  $region6: #{vnetwork_forward.1} parent=0 // pred_check
    _
  $region7: #{vnetwork_forward.1} parent=0 // pred_check_branch
    %17 = sbr.rel (0) target = $region9
  $region8: #{vnetwork_forward.1} parent=0 // pred_region
    _
  $region9: #{vnetwork_forward.1} parent=0 // pred_fallthru
    _
  // Predicated region
  $region10: #{vnetwork_forward.1} parent=0 // pred_check
    _
  $region11: #{vnetwork_forward.1} parent=0 // pred_check_branch
    %19 = sbr.rel (0) target = $region13
  $region12: #{vnetwork_forward.1} parent=0 // pred_region
    _
  $region13: #{vnetwork_forward.1} parent=0 // pred_fallthru
    _
  // Predicated region
  $region14: #{vnetwork_forward.1} parent=0 // pred_check
    _
  $region15: #{vnetwork_forward.1} parent=0 // pred_check_branch
    %21 = sbr.rel (0) target = $region17
  $region16: #{vnetwork_forward.1} parent=0 // pred_region
    _
  $region17: #{vnetwork_forward.1} parent=0 // pred_fallthru
    _
  // Predicated region
  $region18: #{vnetwork_forward.1} parent=0 // pred_check
    _
  $region19: #{vnetwork_forward.1} parent=0 // pred_check_branch
    %23 = sbr.rel (0) target = $region21
  $region20: #{vnetwork_forward.1} parent=0 // pred_region
    _
  $region21: #{vnetwork_forward.1} parent=0 // pred_fallthru
    _
  // Predicated region
  $region22: #{vnetwork_forward.1} parent=0 // pred_check
    _
  $region23: #{vnetwork_forward.1} parent=0 // pred_check_branch
    %25 = sbr.rel (0) target = $region25
  $region24: #{vnetwork_forward.1} parent=0 // pred_region
    _
  $region25: #{vnetwork_forward.1} parent=0 // pred_fallthru
    _
  // Predicated region
  $region26: #{vnetwork_forward.1} parent=0 // pred_check
    _
  $region27: #{vnetwork_forward.1} parent=0 // pred_check_branch
    %27 = sbr.rel (0) target = $region29
  $region28: #{vnetwork_forward.1} parent=0 // pred_region
    _
  $region29: #{vnetwork_forward.1} parent=0 // pred_fallthru
    _
  %v29 = vld [vmem:[%s0] sm:$0xff]
  %v30 = vld [vmem:[%s0 + $0x8] sm:$0xff]
  %v31 = vld [vmem:[%s0 + $0x10] sm:$0xff]
  %v32 = vld [vmem:[%s0 + $0x18] sm:$0xff]
  %v33 = vld [vmem:[%s0 + $0x20] sm:$0xff]
  %v34 = vld [vmem:[%s0 + $0x28] sm:$0xff]
  %v35 = vld [vmem:[%s0 + $0x30] sm:$0xff]
  %v36 = vld [vmem:[%s0 + $0x38] sm:$0xff]
  %v37 = vld [vmem:[%s0 + $0x40] sm:$0xff]
  %v38 = vld [vmem:[%s0 + $0x48] sm:$0xff]
  %v39 = vld [vmem:[%s0 + $0x50] sm:$0xff]
  %v40 = vld [vmem:[%s0 + $0x58] sm:$0xff]
  %v41 = vld [vmem:[%s0 + $0x60] sm:$0xff]
  %v42 = vld [vmem:[%s0 + $0x68] sm:$0xff]
  %v43 = vld [vmem:[%s0 + $0x70] sm:$0xff]
  %v44 = vld [vmem:[%s0 + $0x78] sm:$0xff]
  %v45 = vpack.c.bf16 %v30, %v29
  %v46 = vpack.c.bf16 %v32, %v31
  %v47 = vpack.c.bf16 %v34, %v33
  %v48 = vpack.c.bf16 %v36, %v35
  %v49 = vpack.c.bf16 %v38, %v37
  %v50 = vpack.c.bf16 %v40, %v39
  %v51 = vpack.c.bf16 %v42, %v41
  %v52 = vpack.c.bf16 %v44, %v43
  %v53 = vld [vmem:[%s1] sm:$0xf]
  %v54 = vld [vmem:[%s1 + $0x4] sm:$0xf]
  %v55 = vld [vmem:[%s1 + $0x8] sm:$0xf]
  %v56 = vld [vmem:[%s1 + $0xc] sm:$0xf]
  %v57 = vld [vmem:[%s1 + $0x10] sm:$0xf]
  %v58 = vld [vmem:[%s1 + $0x14] sm:$0xf]
  %v59 = vld [vmem:[%s1 + $0x18] sm:$0xf]
  %v60 = vld [vmem:[%s1 + $0x1c] sm:$0xf]
  %v61 = vld [vmem:[%s2] sm:$0xff]
  %v62 = vld [vmem:[%s2 + $0x8] sm:$0xff]
  %v63 = vld [vmem:[%s2 + $0x10] sm:$0xff]
  %v64 = vld [vmem:[%s2 + $0x18] sm:$0xff]
  %v65 = vld [vmem:[%s2 + $0x20] sm:$0xff]
  %v66 = vld [vmem:[%s2 + $0x28] sm:$0xff]
  %v67 = vld [vmem:[%s2 + $0x30] sm:$0xff]
  %v68 = vld [vmem:[%s2 + $0x38] sm:$0xff]
  %70 = vset.pattern.permute.xlu0 0
  %71 = vperm.xlu0 %70, %v61
  %v72 = vpop.permute.xlu0 %71
  %75 = vset.pattern.permute.xlu0 0
  %76 = vperm.xlu0 %75, %v62
  %v77 = vpop.permute.xlu0 %76
  %80 = vset.pattern.permute.xlu0 0
  %81 = vperm.xlu0 %80, %v63
  %v82 = vpop.permute.xlu0 %81
  %85 = vset.pattern.permute.xlu0 0
  %86 = vperm.xlu0 %85, %v64
  %v87 = vpop.permute.xlu0 %86
  %90 = vset.pattern.permute.xlu0 0
  %91 = vperm.xlu0 %90, %v65
  %v92 = vpop.permute.xlu0 %91
  %95 = vset.pattern.permute.xlu0 0
  %96 = vperm.xlu0 %95, %v66
  %v97 = vpop.permute.xlu0 %96
  %100 = vset.pattern.permute.xlu0 0
  %101 = vperm.xlu0 %100, %v67
  %v102 = vpop.permute.xlu0 %101
  %105 = vset.pattern.permute.xlu0 0
  %106 = vperm.xlu0 %105, %v68
  %v107 = vpop.permute.xlu0 %106
  %v117 = vunpack.c.l.b16 %v53
  %v118 = vunpack.c.l.b16 %v54
  %v119 = vunpack.c.l.b16 %v55
  %v120 = vunpack.c.l.b16 %v56
  %v121 = vunpack.c.l.b16 %v57
  %v122 = vunpack.c.l.b16 %v58
  %v123 = vunpack.c.l.b16 %v59
  %v124 = vunpack.c.l.b16 %v60
  %v125 = vpack.c.b16 %v118, %v117
  %v126 = vpack.c.b16 %v120, %v119
  %v127 = vpack.c.b16 %v122, %v121
  %v128 = vpack.c.b16 %v124, %v123
  %vm129 = vcmask 261120
  %v131 = vsel %vm129, %v125, 0
  %v134 = vsel %vm129, %v126, 0
  %v137 = vsel %vm129, %v127, 0
  %v140 = vsel %vm129, %v128, 0
  %v143 = vsel %vm129, %v45, 0
  %v146 = vsel %vm129, %v46, 0
  %v149 = vsel %vm129, %v47, 0
  %v152 = vsel %vm129, %v48, 0
  %v155 = vsel %vm129, %v49, 0
  %v158 = vsel %vm129, %v50, 0
  %v161 = vsel %vm129, %v51, 0
  %v164 = vsel %vm129, %v52, 0
  %166 = vmatpush.bf16.xpose.msra.mxu0 %v164
  %167 = vmatpush.bf16.xpose.msra.mxu0 %v161
  %168 = vmatpush.bf16.xpose.msra.mxu0 %v158
  %169 = vmatpush.bf16.xpose.msra.mxu0 %v155
  %170 = vmatpush.bf16.xpose.msra.mxu0 %v152
  %171 = vmatpush.bf16.xpose.msra.mxu0 %v149
  %172 = vmatpush.bf16.xpose.msra.mxu0 %v146
  %173 = vmatpush.bf16.xpose.msra.mxu0 %v143
  %174 = vmatmul.bf16.gmra.mxu0 %v131
  %v175 = vpop.f32.mrf.mxu0
  %v176 = vadd.f32 %v72, %v175
  %v177 = vpop.f32.mrf.mxu0
  %v178 = vadd.f32 %v77, %v177
  %179 = vmatmul.bf16.gmra.mxu0 %v134
  %v180 = vpop.f32.mrf.mxu0
  %v181 = vadd.f32 %v82, %v180
  %v182 = vpop.f32.mrf.mxu0
  %v183 = vadd.f32 %v87, %v182
  %184 = vmatmul.bf16.gmra.mxu0 %v137
  %v185 = vpop.f32.mrf.mxu0
  %v186 = vadd.f32 %v92, %v185
  %v187 = vpop.f32.mrf.mxu0
  %v188 = vadd.f32 %v97, %v187
  %189 = vmatmul.bf16.gmra.mxu0 %v140
  %v190 = vpop.f32.mrf.mxu0
  %v191 = vadd.f32 %v102, %v190
  %v192 = vpop.f32.mrf.mxu0
  %v193 = vadd.f32 %v107, %v192
  %194 = vdwg.mxu0
  %v195 = vpack.c.bf16 %v178, %v176
  %v196 = vpack.c.bf16 %v183, %v181
  %v197 = vpack.c.bf16 %v188, %v186
  %v198 = vpack.c.bf16 %v193, %v191
  %v199 = vunpack.c.l.bf16 %v195
  %v200 = vunpack.c.h.bf16 %v195
  %v201 = vunpack.c.l.bf16 %v196
  %v202 = vunpack.c.h.bf16 %v196
  %v203 = vunpack.c.l.bf16 %v197
  %v204 = vunpack.c.h.bf16 %v197
  %v205 = vunpack.c.l.bf16 %v198
  %v206 = vunpack.c.h.bf16 %v198
  %v207 = vtanh.pop %v199
  %v208 = vtanh.pop %v200
  %v209 = vtanh.pop %v201
  %v210 = vtanh.pop %v202
  %v211 = vtanh.pop %v203
  %v212 = vtanh.pop %v204
  %v213 = vtanh.pop %v205
  %v214 = vtanh.pop %v206
  %v215 = vpack.c.bf16 %v208, %v207
  %v216 = vpack.c.bf16 %v210, %v209
  %v217 = vpack.c.bf16 %v212, %v211
  %v218 = vpack.c.bf16 %v214, %v213
  %v219 = vld [vmem:[%s3] sm:$0xf]
  %v220 = vld [vmem:[%s3 + $0x4] sm:$0xf]
  %v221 = vld [vmem:[%s3 + $0x8] sm:$0xf]
  %v222 = vld [vmem:[%s3 + $0xc] sm:$0xf]
  %v223 = vld [vmem:[%s3 + $0x10] sm:$0xf]
  %v224 = vld [vmem:[%s3 + $0x14] sm:$0xf]
  %v225 = vld [vmem:[%s3 + $0x18] sm:$0xf]
  %v226 = vld [vmem:[%s3 + $0x1c] sm:$0xf]
  %v227 = vld [vmem:[%s4] sm:$0xff]
  %v228 = vld [vmem:[%s4 + $0x8] sm:$0xff]
  %v229 = vld [vmem:[%s4 + $0x10] sm:$0xff]
  %v230 = vld [vmem:[%s4 + $0x18] sm:$0xff]
  %v231 = vld [vmem:[%s4 + $0x20] sm:$0xff]
  %v232 = vld [vmem:[%s4 + $0x28] sm:$0xff]
  %v233 = vld [vmem:[%s4 + $0x30] sm:$0xff]
  %v234 = vld [vmem:[%s4 + $0x38] sm:$0xff]
  %236 = vset.pattern.permute.xlu0 0
  %237 = vperm.xlu0 %236, %v227
  %v238 = vpop.permute.xlu0 %237
  %241 = vset.pattern.permute.xlu0 0
  %242 = vperm.xlu0 %241, %v228
  %v243 = vpop.permute.xlu0 %242
  %246 = vset.pattern.permute.xlu0 0
  %247 = vperm.xlu0 %246, %v229
  %v248 = vpop.permute.xlu0 %247
  %251 = vset.pattern.permute.xlu0 0
  %252 = vperm.xlu0 %251, %v230
  %v253 = vpop.permute.xlu0 %252
  %256 = vset.pattern.permute.xlu0 0
  %257 = vperm.xlu0 %256, %v231
  %v258 = vpop.permute.xlu0 %257
  %261 = vset.pattern.permute.xlu0 0
  %262 = vperm.xlu0 %261, %v232
  %v263 = vpop.permute.xlu0 %262
  %266 = vset.pattern.permute.xlu0 0
  %267 = vperm.xlu0 %266, %v233
  %v268 = vpop.permute.xlu0 %267
  %271 = vset.pattern.permute.xlu0 0
  %272 = vperm.xlu0 %271, %v234
  %v273 = vpop.permute.xlu0 %272
  %v283 = vunpack.c.l.b16 %v219
  %v284 = vunpack.c.l.b16 %v220
  %v285 = vunpack.c.l.b16 %v221
  %v286 = vunpack.c.l.b16 %v222
  %v287 = vunpack.c.l.b16 %v223
  %v288 = vunpack.c.l.b16 %v224
  %v289 = vunpack.c.l.b16 %v225
  %v290 = vunpack.c.l.b16 %v226
  %v291 = vpack.c.b16 %v284, %v283
  %v292 = vpack.c.b16 %v286, %v285
  %v293 = vpack.c.b16 %v288, %v287
  %v294 = vpack.c.b16 %v290, %v289
  %vm295 = vcmask 523264
  %v297 = vsel %vm295, %v291, 0
  %v300 = vsel %vm295, %v292, 0
  %v303 = vsel %vm295, %v293, 0
  %v306 = vsel %vm295, %v294, 0
  %308 = vmatpush.bf16.msra.mxu0 0
  %309 = vmatpush.bf16.msra.mxu0 0
  %310 = vmatpush.bf16.msra.mxu0 0
  %311 = vmatpush.bf16.msra.mxu0 0
  %312 = vmatpush.bf16.msra.mxu0 %v218
  %313 = vmatpush.bf16.msra.mxu0 %v217
  %314 = vmatpush.bf16.msra.mxu0 %v216
  %315 = vmatpush.bf16.msra.mxu0 %v215
  %316 = vmatmul.bf16.gmra.mxu0 %v297
  %v317 = vpop.f32.mrf.mxu0
  %v318 = vadd.f32 %v238, %v317
  %v319 = vpop.f32.mrf.mxu0
  %v320 = vadd.f32 %v243, %v319
  %321 = vmatmul.bf16.gmra.mxu0 %v300
  %v322 = vpop.f32.mrf.mxu0
  %v323 = vadd.f32 %v248, %v322
  %v324 = vpop.f32.mrf.mxu0
  %v325 = vadd.f32 %v253, %v324
  %326 = vmatmul.bf16.gmra.mxu0 %v303
  %v327 = vpop.f32.mrf.mxu0
  %v328 = vadd.f32 %v258, %v327
  %v329 = vpop.f32.mrf.mxu0
  %v330 = vadd.f32 %v263, %v329
  %331 = vmatmul.bf16.gmra.mxu0 %v306
  %v332 = vpop.f32.mrf.mxu0
  %v333 = vadd.f32 %v268, %v332
  %v334 = vpop.f32.mrf.mxu0
  %v335 = vadd.f32 %v273, %v334
  %336 = vdwg.mxu0
  %v337 = vpack.c.bf16 %v318, %v318
  %v338 = vpack.c.bf16 %v320, %v320
  %v339 = vpack.c.bf16 %v323, %v323
  %v340 = vpack.c.bf16 %v325, %v325
  %v341 = vpack.c.bf16 %v328, %v328
  %v342 = vpack.c.bf16 %v330, %v330
  %v343 = vpack.c.bf16 %v333, %v333
  %v344 = vpack.c.bf16 %v335, %v335
  %v345 = vunpack.c.l.bf16 %v337
  %v346 = vunpack.c.l.bf16 %v338
  %v347 = vunpack.c.l.bf16 %v339
  %v348 = vunpack.c.l.bf16 %v340
  %v349 = vunpack.c.l.bf16 %v341
  %v350 = vunpack.c.l.bf16 %v342
  %v351 = vunpack.c.l.bf16 %v343
  %v352 = vunpack.c.l.bf16 %v344
  %v353 = vtanh.pop %v345
  %v354 = vtanh.pop %v346
  %v355 = vtanh.pop %v347
  %v356 = vtanh.pop %v348
  %v357 = vtanh.pop %v349
  %v358 = vtanh.pop %v350
  %v359 = vtanh.pop %v351
  %v360 = vtanh.pop %v352
  %v361 = vpack.c.bf16 %v353, %v353
  %v362 = vpack.c.bf16 %v354, %v354
  %v363 = vpack.c.bf16 %v355, %v355
  %v364 = vpack.c.bf16 %v356, %v356
  %v365 = vpack.c.bf16 %v357, %v357
  %v366 = vpack.c.bf16 %v358, %v358
  %v367 = vpack.c.bf16 %v359, %v359
  %v368 = vpack.c.bf16 %v360, %v360
  %v369 = vld [vmem:[%s5] sm:$0xff]
  %v370 = vld [vmem:[%s5 + $0x8] sm:$0xff]
  %v371 = vld [vmem:[%s5 + $0x10] sm:$0xff]
  %v372 = vld [vmem:[%s5 + $0x18] sm:$0xff]
  %v373 = vld [vmem:[%s5 + $0x20] sm:$0xff]
  %v374 = vld [vmem:[%s5 + $0x28] sm:$0xff]
  %v375 = vld [vmem:[%s5 + $0x30] sm:$0xff]
  %v376 = vld [vmem:[%s5 + $0x38] sm:$0xff]
  %v377 = vld [vmem:[#allocation2] sm:$0x1]
  %v378 = vunpack.c.l.bf16 %v361
  %v379 = vunpack.c.l.bf16 %v362
  %v380 = vunpack.c.l.bf16 %v363
  %v381 = vunpack.c.l.bf16 %v364
  %v382 = vunpack.c.l.bf16 %v365
  %v383 = vunpack.c.l.bf16 %v366
  %v384 = vunpack.c.l.bf16 %v367
  %v385 = vunpack.c.l.bf16 %v368
  %387 = vset.pattern.permute.xlu0 0
  %388 = vperm.xlu0 %387, %v369
  %v389 = vpop.permute.xlu0 %388
  %392 = vset.pattern.permute.xlu0 0
  %393 = vperm.xlu0 %392, %v370
  %v394 = vpop.permute.xlu0 %393
  %397 = vset.pattern.permute.xlu0 0
  %398 = vperm.xlu0 %397, %v371
  %v399 = vpop.permute.xlu0 %398
  %402 = vset.pattern.permute.xlu0 0
  %403 = vperm.xlu0 %402, %v372
  %v404 = vpop.permute.xlu0 %403
  %407 = vset.pattern.permute.xlu0 0
  %408 = vperm.xlu0 %407, %v373
  %v409 = vpop.permute.xlu0 %408
  %412 = vset.pattern.permute.xlu0 0
  %413 = vperm.xlu0 %412, %v374
  %v414 = vpop.permute.xlu0 %413
  %417 = vset.pattern.permute.xlu0 0
  %418 = vperm.xlu0 %417, %v375
  %v419 = vpop.permute.xlu0 %418
  %422 = vset.pattern.permute.xlu0 0
  %423 = vperm.xlu0 %422, %v376
  %v424 = vpop.permute.xlu0 %423
  %v426 = vmul.f32 %v378, %v389
  %v427 = vmul.f32 %v379, %v394
  %v428 = vmul.f32 %v380, %v399
  %v429 = vmul.f32 %v381, %v404
  %v430 = vmul.f32 %v382, %v409
  %v431 = vmul.f32 %v383, %v414
  %v432 = vmul.f32 %v384, %v419
  %v433 = vmul.f32 %v385, %v424
  %v434 = vadd.f32 %v426, %v427
  %v435 = vadd.f32 %v434, %v428
  %v436 = vadd.f32 %v435, %v429
  %v437 = vadd.f32 %v436, %v430
  %v438 = vadd.f32 %v437, %v431
  %v439 = vadd.f32 %v438, %v432
  %v440 = vadd.f32 %v439, %v433
  %v441 = vrot.slane %v440, 4
  %v442 = vadd.f32 %v440, %v441
  %v443 = vrot.slane %v442, 2
  %v444 = vadd.f32 %v442, %v443
  %v445 = vrot.slane %v444, 1
  %v446 = vadd.f32 %v444, %v445
  %448 = vset.pattern.permute.xlu0 0
  %449 = vperm.xlu0 %448, %v377
  %v450 = vpop.permute.xlu0 %449
  %v452 = vperm.slane %v450, 0
  %v453 = vadd.f32 %v446, %v452
  %454 = vst [vmem:[%s7] sm:$0x1] %v453
  // Predicated region
  $region30: #{vnetwork_forward.1} parent=0 // pred_check
    _
  $region31: #{vnetwork_forward.1} parent=0 // pred_check_branch
    %456 = sbr.rel (0) target = $region33
  $region32: #{vnetwork_forward.1} parent=0 // pred_region
    _
  $region33: #{vnetwork_forward.1} parent=0 // pred_fallthru
    _
  // Predicated region
  $region34: #{vnetwork_forward.1} parent=0 // pred_check
    _
  $region35: #{vnetwork_forward.1} parent=0 // pred_check_branch
    %458 = sbr.rel (0) target = $region37
  $region36: #{vnetwork_forward.1} parent=0 // pred_region
    _
  $region37: #{vnetwork_forward.1} parent=0 // pred_fallthru
    _

</llo_original>
